<compile_context>
chip_gen: v7x
topology: tpu7x:2x2x1
jax: 0.10.0
libtpu: 0.0.40
codegen_flags: <defaults>
</compile_context>

<pallas_src>
import math
import functools

import jax
import jax.numpy as jnp
from jax.experimental import pallas as pl
from jax.experimental.pallas import tpu as pltpu

# Per-kernel working-set budget: fits v7x's 64 MiB physical VMEM with headroom,
# trivially fits v5e/v6e's 128 MiB.
_VMEM_BUDGET = 40 * 1024 * 1024


def _vmem_limit(est_bytes):
    """Derived vmem_limit_bytes: estimate + 25% headroom, clamped to [32,56] MiB."""
    return int(min(56 << 20, max(32 << 20, est_bytes * 5 // 4 + (2 << 20))))


# --------------------- Tiled matmul + bias (linear) kernel ------------------ #
def _matmul_bias_kernel(x_ref, w_ref, b_ref, o_ref, acc_ref):
    # grid = (M/tm, N/tn, K/tk); K is the reduction ("arbitrary") axis.
    @pl.when(pl.program_id(2) == 0)
    def _init():
        acc_ref[...] = jnp.zeros(acc_ref.shape, jnp.float32)

    acc_ref[...] += jnp.dot(x_ref[...], w_ref[...],
                            preferred_element_type=jnp.float32)

    @pl.when(pl.program_id(2) == pl.num_programs(2) - 1)
    def _finalize():
        o_ref[...] = (acc_ref[...] + b_ref[...]).astype(o_ref.dtype)


def _pick_linear_tiles(m, n, k, in_item, out_item):
    """Largest (tm, tn, tk) dividing the shape that fits the VMEM budget."""
    tms = [t for t in (512, 256, 128) if m % t == 0] or [m]
    tns = [t for t in (1024, 512, 256, 128) if n % t == 0] or [n]
    tks = [t for t in (1024, 512, 256, 128) if k % t == 0] or [k]

    def est(tm, tn, tk):
        return (2 * (tm * tk + tk * tn) * in_item   # x, w (double-buffered)
                + 2 * tn * 4                        # bias (f32)
                + 2 * tm * tn * out_item            # output (double-buffered)
                + tm * tn * 4)                      # f32 accumulator scratch

    for tm in tms:
        for tn in tns:
            for tk in tks:
                if est(tm, tn, tk) <= _VMEM_BUDGET:
                    return tm, tn, tk, est(tm, tn, tk)
    tm, tn, tk = tms[-1], tns[-1], tks[-1]
    # TODO(synk): for shapes with no 128-aligned divisor this falls back to
    # full-dim blocks; pad/mask tail blocks for very long ragged sequences.
    return tm, tn, tk, est(tm, tn, tk)


def linear(x, w, b, *, compute_dtype, out_dtype):
    """y = x @ w + b with (M, N, K) tiling and an f32 VMEM accumulator."""
    *lead, d_in = x.shape
    d_out = w.shape[1]
    x2 = x.reshape(-1, d_in).astype(compute_dtype)
    w = w.astype(compute_dtype)           # no-op when params are pre-cast
    b = b.reshape(1, d_out).astype(jnp.float32)
    m = x2.shape[0]

    tm, tn, tk, est = _pick_linear_tiles(
        m, d_out, d_in,
        jnp.dtype(compute_dtype).itemsize, jnp.dtype(out_dtype).itemsize)
    grid = (m // tm, d_out // tn, d_in // tk)

    out = pl.pallas_call(
        _matmul_bias_kernel,
        out_shape=jax.ShapeDtypeStruct((m, d_out), out_dtype),
        grid_spec=pltpu.PrefetchScalarGridSpec(
            num_scalar_prefetch=0,
            grid=grid,
            in_specs=[
                pl.BlockSpec((tm, tk), lambda i, j, k: (i, k)),
                pl.BlockSpec((tk, tn), lambda i, j, k: (k, j)),
                pl.BlockSpec((1, tn), lambda i, j, k: (0, j)),
            ],
            out_specs=pl.BlockSpec((tm, tn), lambda i, j, k: (i, j)),
            scratch_shapes=[pltpu.VMEM((tm, tn), jnp.float32)],
        ),
        compiler_params=pltpu.CompilerParams(
            dimension_semantics=("parallel", "parallel", "arbitrary"),
            vmem_limit_bytes=_vmem_limit(est),
        ),
    )(x2, w, b)
    return out.reshape(*lead, d_out)


# ------------------------- Flash attention kernel --------------------------- #
def _flash_mha_kernel(*refs, h, d_k, has_mask, nq, nk, use_approx_recip):
    if has_mask:
        tbl_ref, q_ref, k_ref, v_ref, mask_ref, o_ref, m_ref, l_ref, acc_ref = refs
    else:
        q_ref, k_ref, v_ref, o_ref, m_ref, l_ref, acc_ref = refs
        tbl_ref = mask_ref = None

    kv = pl.program_id(2)

    @pl.when(kv == 0)
    def _init():
        m_ref[...] = jnp.full(m_ref.shape, -jnp.inf, jnp.float32)
        l_ref[...] = jnp.zeros(l_ref.shape, jnp.float32)
        acc_ref[...] = jnp.zeros(acc_ref.shape, jnp.float32)

    def _body():
        # 1/sqrt(d_k) is folded into wq/bq at prepare time -> no q*scale here.
        q = q_ref[0]                  # (Tq, d_model) in compute dtype
        k = k_ref[0]                  # (Tk, d_model)
        v = v_ref[0]                  # (Tk, d_model)
        if has_mask:
            keep = mask_ref[0] != 0   # (Tq, Tk) int8 -> bool, shared by heads

        dn_qk = (((1,), (1,)), ((), ()))   # contract d_k dims, no explicit k.T
        dn_pv = (((1,), (0,)), ((), ()))

        for hd in range(h):           # static unroll; heads are lane-col slices
            col = slice(hd * d_k, (hd + 1) * d_k)
            s = jax.lax.dot_general(q[:, col], k[:, col], dn_qk,
                                    preferred_element_type=jnp.float32)  # (Tq,Tk)
            if has_mask:
                s = jnp.where(keep, s, jnp.float32(-1e9))
            m_prev = m_ref[hd]                                           # (Tq,1)
            m_new = jnp.maximum(m_prev, jnp.max(s, axis=-1, keepdims=True))
            alpha = jnp.exp(m_prev - m_new)
            p = jnp.exp(s - m_new)                                       # f32
            l_ref[hd] = alpha * l_ref[hd] + jnp.sum(p, axis=-1, keepdims=True)
            acc_ref[:, col] = alpha * acc_ref[:, col] + jax.lax.dot_general(
                p.astype(v.dtype), v[:, col], dn_pv,
                preferred_element_type=jnp.float32)                      # (Tq,d_k)
            m_ref[hd] = m_new

    if has_mask:
        b = pl.program_id(0)
        qi = pl.program_id(1)
        # A kv block is computed iff the prefetched clamp table points at itself
        # (fully-masked blocks were clamped to an earlier valid block).
        pl.when(tbl_ref[(b * nq + qi) * nk + kv] == kv)(_body)
    else:
        _body()

    @pl.when(kv == pl.num_programs(2) - 1)
    def _finalize():
        # Normalize in place per head, then ONE lane-dense (Tq, d_model) store.
        for hd in range(h):
            col = slice(hd * d_k, (hd + 1) * d_k)
            l = l_ref[hd]
            inv = pl.reciprocal(l, approx=True) if use_approx_recip else 1.0 / l
            acc_ref[:, col] = acc_ref[:, col] * inv
        o_ref[0] = acc_ref[...].astype(o_ref.dtype)


def _flash_est(tq, tk, d_model, h, in_item, out_item, has_mask):
    io = 2 * (tq * d_model + 2 * tk * d_model) * in_item   # q,k,v double-buffered
    io += 2 * tq * d_model * out_item                      # out double-buffered
    if has_mask:
        io += 2 * tq * tk                                  # int8 mask
    scr = (2 * h * tq * 128 + tq * d_model) * 4            # m,l (lane-padded), acc
    return io + scr


def _pick_flash_tiles(B, Sq, Sk, d_model, h, in_item, out_item, has_mask):
    """Prefer large tq (fewer K/V HBM passes), then large tk, within budget."""
    tqs = [t for t in (512, 256, 128) if Sq % t == 0] or [Sq]
    tks = [t for t in (1024, 512, 256, 128) if Sk % t == 0] or [Sk]
    for tq in tqs:
        for tk in tks:
            if _flash_est(tq, tk, d_model, h, in_item, out_item, has_mask) <= _VMEM_BUDGET:
                # v7x megacore: keep B*(Sq//tq) >= 2 so both TensorCores get work.
                while (B * (Sq // tq) < 2 and tq > 128
                       and tq % 2 == 0 and Sq % (tq // 2) == 0):
                    tq //= 2
                return tq, tk, _flash_est(tq, tk, d_model, h, in_item, out_item, has_mask)
    tq, tk = tqs[-1], tks[-1]
    # TODO(synk): non-128-divisible Sq/Sk fall back to full-dim blocks; pad or
    # mask tail blocks before using very long ragged sequence lengths.
    return tq, tk, _flash_est(tq, tk, d_model, h, in_item, out_item, has_mask)


def flash_attention(q_arr, k_arr, v_arr, cols, mask_i8, *, h, d_model, out_dtype):
    """Scaled-dot-product attention over lane-dense (B, S, h*d_k) activations.

    q_arr/k_arr/v_arr may all be the SAME fused (B, S, 3*d_model) QKV slab;
    `cols` are the last-dim block indices selecting the q/k/v thirds.
    grid = (B, Sq-blocks, Sk-blocks); Sk is streamed with an online softmax.
    With a mask, fully-masked kv blocks skip both compute and K/V DMA via a
    scalar-prefetched SMEM clamp table.
    """
    B, Sq, _ = q_arr.shape
    Sk = k_arr.shape[1]
    d_k = d_model // h
    has_mask = mask_i8 is not None
    in_item = jnp.dtype(q_arr.dtype).itemsize
    out_item = jnp.dtype(out_dtype).itemsize

    tq, tk, est = _pick_flash_tiles(B, Sq, Sk, d_model, h, in_item, out_item, has_mask)
    nq, nk = Sq // tq, Sk // tk
    grid = (B, nq, nk)
    q_col, k_col, v_col = cols

    kernel = functools.partial(
        _flash_mha_kernel, h=h, d_k=d_k, has_mask=has_mask, nq=nq, nk=nk,
        use_approx_recip=(jnp.dtype(out_dtype) == jnp.dtype(jnp.bfloat16)))

    scratch = [
        pltpu.VMEM((h, tq, 1), jnp.float32),     # running max m per head
        pltpu.VMEM((h, tq, 1), jnp.float32),     # running sum l per head
        pltpu.VMEM((tq, d_model), jnp.float32),  # unnormalized context (all heads)
    ]

    if has_mask:
        # Block-level clamp table: for each (b, qi, ki), the index of the most
        # recent kv block (<= ki) with any unmasked entry (0 if none yet).
        mb = (mask_i8 != 0).reshape(B, nq, tq, nk, tk)
        valid = jnp.any(mb, axis=(2, 4))                           # (B, nq, nk)
        idx = jnp.arange(nk, dtype=jnp.int32)
        cand = jnp.where(valid, idx[None, None, :], jnp.int32(-1))
        tbl = jnp.maximum(jax.lax.cummax(cand, axis=2), 0).astype(jnp.int32).reshape(-1)
        # TODO(synk): rows whose mask is all-zero across every kv block produce
        # zeros (not the reference's uniform attention) under block skipping.

        def kv_idx(b, qi, ki, t):
            return t[(b * nq + qi) * nk + ki]

        in_specs = [
            pl.BlockSpec((1, tq, d_model),
                         lambda b, qi, ki, t, c=q_col: (b, qi, c)),
            pl.BlockSpec((1, tk, d_model),
                         lambda b, qi, ki, t, c=k_col: (b, kv_idx(b, qi, ki, t), c)),
            pl.BlockSpec((1, tk, d_model),
                         lambda b, qi, ki, t, c=v_col: (b, kv_idx(b, qi, ki, t), c)),
            pl.BlockSpec((1, tq, tk),
                         lambda b, qi, ki, t: (b, qi, kv_idx(b, qi, ki, t))),
        ]
        out_spec = pl.BlockSpec((1, tq, d_model), lambda b, qi, ki, t: (b, qi, 0))
        grid_spec = pltpu.PrefetchScalarGridSpec(
            num_scalar_prefetch=1, grid=grid,
            in_specs=in_specs, out_specs=out_spec, scratch_shapes=scratch)
        args = (tbl, q_arr, k_arr, v_arr, mask_i8)
    else:
        in_specs = [
            pl.BlockSpec((1, tq, d_model), lambda b, qi, ki, c=q_col: (b, qi, c)),
            pl.BlockSpec((1, tk, d_model), lambda b, qi, ki, c=k_col: (b, ki, c)),
            pl.BlockSpec((1, tk, d_model), lambda b, qi, ki, c=v_col: (b, ki, c)),
        ]
        out_spec = pl.BlockSpec((1, tq, d_model), lambda b, qi, ki: (b, qi, 0))
        grid_spec = pltpu.PrefetchScalarGridSpec(
            num_scalar_prefetch=0, grid=grid,
            in_specs=in_specs, out_specs=out_spec, scratch_shapes=scratch)
        args = (q_arr, k_arr, v_arr)

    return pl.pallas_call(
        kernel,
        out_shape=jax.ShapeDtypeStruct((B, Sq, d_model), out_dtype),
        grid_spec=grid_spec,
        compiler_params=pltpu.CompilerParams(
            dimension_semantics=("parallel", "parallel", "arbitrary"),
            vmem_limit_bytes=_vmem_limit(est),
        ),
    )(*args)


# ------------------------- MultiHeadedAttention ----------------------------- #
def init_mha_params(key_, h, d_model):
    assert d_model % h == 0
    keys = jax.random.split(key_, 8)
    w_scale = 1.0 / math.sqrt(d_model)
    def w(k):  return jax.random.normal(k, (d_model, d_model), jnp.float32) * w_scale
    def bb(k): return jax.random.normal(k, (1, d_model), jnp.float32) * 0.01
    return dict(h=h, d_model=d_model,
                wq=w(keys[0]), bq=bb(keys[1]),
                wk=w(keys[2]), bk=bb(keys[3]),
                wv=w(keys[4]), bv=bb(keys[5]),
                wo=w(keys[6]), bo=bb(keys[7]))


def prepare_mha_params(raw, compute_dtype=jnp.bfloat16):
    """One-time weight prep (hoisted out of the forward): fold 1/sqrt(d_k) into
    wq/bq, concatenate the fused QKV weights and cast everything once."""
    h, d_model = raw["h"], raw["d_model"]
    scale = 1.0 / math.sqrt(d_model // h)
    wq_s, bq_s = raw["wq"] * scale, raw["bq"] * scale
    w_qkv = jnp.concatenate([wq_s, raw["wk"], raw["wv"]], axis=1).astype(compute_dtype)
    b_qkv = jnp.concatenate([bq_s, raw["bk"], raw["bv"]], axis=1).astype(jnp.float32)
    return dict(
        h=h, d_model=d_model, compute_dtype=compute_dtype,
        w_qkv=w_qkv, b_qkv=b_qkv,
        wq=wq_s.astype(compute_dtype), bq=bq_s.astype(jnp.float32),
        wk=raw["wk"].astype(compute_dtype), bk=raw["bk"].astype(jnp.float32),
        wv=raw["wv"].astype(compute_dtype), bv=raw["bv"].astype(jnp.float32),
        wo=raw["wo"].astype(compute_dtype), bo=raw["bo"].astype(jnp.float32),
    )


def multi_head_attention(params, query, key, value, mask=None):
    """Pallas forward pass; returns the (B, Sq, d_model) output, matching the
    PyTorch module's forward(). Pass params from prepare_mha_params()."""
    h, d_model = params["h"], params["d_model"]
    cdt = params["compute_dtype"]
    mask_i8 = None if mask is None else (mask != 0).astype(jnp.int8)

    # NOTE: fused-QKV path is gated on Python object identity; equal-but-distinct
    # arrays fall back to three separate projections (performance only).
    is_self = query is key and key is value
    if is_self and d_model % 128 == 0:
        # Fused QKV matmul; the (B, S, 3*d_model) slab is fed straight into the
        # attention kernel (q/k/v selected by last-dim block index) -> no split.
        qkv = linear(query, params["w_qkv"], params["b_qkv"],
                     compute_dtype=cdt, out_dtype=cdt)
        ctx = flash_attention(qkv, qkv, qkv, (0, 1, 2), mask_i8,
                              h=h, d_model=d_model, out_dtype=cdt)
    elif is_self:
        # Small / non-128-aligned d_model: fused matmul, then split (lane-offset
        # blocks inside a 3*d_model slab would not be 128-aligned).
        qkv = linear(query, params["w_qkv"], params["b_qkv"],
                     compute_dtype=cdt, out_dtype=cdt)
        q_p, k_p, v_p = jnp.split(qkv, 3, axis=-1)
        ctx = flash_attention(q_p, k_p, v_p, (0, 0, 0), mask_i8,
                              h=h, d_model=d_model, out_dtype=cdt)
    else:
        q_p = linear(query, params["wq"], params["bq"], compute_dtype=cdt, out_dtype=cdt)
        k_p = linear(key, params["wk"], params["bk"], compute_dtype=cdt, out_dtype=cdt)
        v_p = linear(value, params["wv"], params["bv"], compute_dtype=cdt, out_dtype=cdt)
        ctx = flash_attention(q_p, k_p, v_p, (0, 0, 0), mask_i8,
                              h=h, d_model=d_model, out_dtype=cdt)

    # TODO(synk): nn.Dropout(p=0.1) on attention probs is identity at eval time.
    # TODO(synk): p_attn (self.attn) is not materialized to HBM — forward() does
    # not return it and the O(Sq*Sk) writeback would defeat flash streaming.
    return linear(ctx, params["wo"], params["bo"],
                  compute_dtype=cdt, out_dtype=jnp.float32)


# ------------------------------ Reference ----------------------------------- #
def reference_mha(params, query, key, value, mask=None):
    h = params["h"]; d_model = params["d_model"]; d_k = d_model // h
    B, Sq, _ = query.shape; Sk = key.shape[1]
    lin = lambda x, w, b: x @ w + b
    q = lin(query, params["wq"], params["bq"]).reshape(B, Sq, h, d_k).transpose(0, 2, 1, 3)
    k = lin(key,   params["wk"], params["bk"]).reshape(B, Sk, h, d_k).transpose(0, 2, 1, 3)
    v = lin(value, params["wv"], params["bv"]).reshape(B, Sk, h, d_k).transpose(0, 2, 1, 3)
    scores = jnp.einsum("bhqd,bhkd->bhqk", q, k) / math.sqrt(d_k)
    if mask is not None:
        scores = jnp.where(mask[:, None, :, :] == 0, -1e9, scores)
    p = jax.nn.softmax(scores, axis=-1)
    ctx = jnp.einsum("bhqk,bhkd->bhqd", p, v)
    x = ctx.transpose(0, 2, 1, 3).reshape(B, Sq, d_model)
    return lin(x, params["wo"], params["bo"])


# --------------------------------- Main -------------------------------------- #
if __name__ == "__main__":
    root = jax.random.PRNGKey(0)
    kp, kx, kq, kk, kv, kp2, kx2 = jax.random.split(root, 7)

    # ---- small-shape tests (module-sized config) ----
    B, S, d_model, h = 2, 8, 32, 4
    raw = init_mha_params(kp, h, d_model)
    x = jax.random.normal(kx, (B, S, d_model), jnp.float32)
    mask = jnp.tril(jnp.ones((S, S), jnp.float32))[None].repeat(B, axis=0)  # causal
    ref = reference_mha(raw, x, x, x, mask=mask)

    # self-attention, f32 compute: strict check
    prep_f32 = prepare_mha_params(raw, jnp.float32)
    out_f32 = jax.block_until_ready(multi_head_attention(prep_f32, x, x, x, mask=mask))
    assert out_f32.shape == (B, S, d_model)
    assert jnp.allclose(out_f32, ref, atol=1e-4, rtol=1e-4)

    # self-attention, default bf16 MXU path: loose check vs f32 reference
    prep_bf16 = prepare_mha_params(raw, jnp.bfloat16)
    out_bf16 = jax.block_until_ready(multi_head_attention(prep_bf16, x, x, x, mask=mask))
    assert out_bf16.shape == (B, S, d_model)
    assert jnp.allclose(out_bf16, ref, atol=5e-2, rtol=5e-2)

    # cross-attention (separate projection path), no mask, f32
    q_in = jax.random.normal(kq, (B, S, d_model), jnp.float32)
    k_in = jax.random.normal(kk, (B, S, d_model), jnp.float32)
    v_in = jax.random.normal(kv, (B, S, d_model), jnp.float32)
    out_x = jax.block_until_ready(
        multi_head_attention(prep_f32, q_in, k_in, v_in, mask=None))
    ref_x = reference_mha(raw, q_in, k_in, v_in, mask=None)
    assert jnp.allclose(out_x, ref_x, atol=1e-4, rtol=1e-4)

    # ---- tiled test: multi q/kv blocks, 128-wide heads, fused QKV slab feed,
    #      causal block skipping + clamped K/V index maps ----
    B2, S2, dm2, h2 = 2, 384, 256, 2
    raw2 = init_mha_params(kp2, h2, dm2)
    x2 = jax.random.normal(kx2, (B2, S2, dm2), jnp.float32)
    mask2 = jnp.tril(jnp.ones((S2, S2), jnp.float32))[None].repeat(B2, axis=0)
    prep2 = prepare_mha_params(raw2, jnp.float32)
    out2 = jax.block_until_ready(multi_head_attention(prep2, x2, x2, x2, mask=mask2))
    ref2 = reference_mha(raw2, x2, x2, x2, mask=mask2)
    assert out2.shape == (B2, S2, dm2)
    assert jnp.allclose(out2, ref2, atol=2e-2, rtol=2e-2)

    print("KERNEL_OK")
</pallas_src>

<mosaic_0001>
module attributes {stable_mosaic.version = 11 : i64} {
  func.func @_matmul_bias_kernel(%arg0: i32, %arg1: i32, %arg2: i32, %arg3: memref<16x32xf32, #tpu.memory_space<vmem>>, %arg4: memref<32x96xf32, #tpu.memory_space<vmem>>, %arg5: memref<1x96xf32, #tpu.memory_space<vmem>>, %arg6: memref<16x96xf32, #tpu.memory_space<vmem>>, %arg7: memref<16x96xf32, #tpu.memory_space<vmem>>) attributes {dimension_semantics = [#tpu.dimension_semantics<parallel>, #tpu.dimension_semantics<parallel>, #tpu.dimension_semantics<arbitrary>], iteration_bounds = array<i64: 1, 1, 1>, scalar_prefetch = 0 : i64, scratch_operands = 1 : i64, tpu.core_type = #tpu.core_type<tc>, window_params = [{transform_indices = @transform_0, window_bounds = array<i64: 16, 32>}, {transform_indices = @transform_1, window_bounds = array<i64: 32, 96>}, {transform_indices = @transform_2, window_bounds = array<i64: 1, 96>}, {transform_indices = @transform_3, window_bounds = array<i64: 16, 96>}]} {
    %c0_i32 = arith.constant 0 : i32
    %0 = arith.cmpi eq, %arg2, %c0_i32 : i32
    %1 = arith.extui %0 : i1 to i32
    %c0_i32_0 = arith.constant 0 : i32
    %2 = arith.cmpi ne, %1, %c0_i32_0 : i32
    scf.if %2 {
      %cst_10 = arith.constant 0.000000e+00 : f32
      %12 = vector.broadcast %cst_10 : f32 to vector<16x96xf32>
      %c0_11 = arith.constant 0 : index
      %c0_12 = arith.constant 0 : index
      %13 = vector.load %arg7[%c0_11, %c0_12] : memref<16x96xf32, #tpu.memory_space<vmem>>, vector<16x96xf32>
      tpu.vector_store %arg7[%c0_11, %c0_12], %12 {strides = array<i32>} : memref<16x96xf32, #tpu.memory_space<vmem>>, vector<16x96xf32>,
    } else {
    }
    %c0 = arith.constant 0 : index
    %c0_1 = arith.constant 0 : index
    %3 = vector.load %arg7[%c0, %c0_1] : memref<16x96xf32, #tpu.memory_space<vmem>>, vector<16x96xf32>
    %c0_2 = arith.constant 0 : index
    %c0_3 = arith.constant 0 : index
    %4 = vector.load %arg3[%c0_2, %c0_3] : memref<16x32xf32, #tpu.memory_space<vmem>>, vector<16x32xf32>
    %c0_4 = arith.constant 0 : index
    %c0_5 = arith.constant 0 : index
    %5 = vector.load %arg4[%c0_4, %c0_5] : memref<32x96xf32, #tpu.memory_space<vmem>>, vector<32x96xf32>
    %cst = arith.constant dense<0.000000e+00> : vector<16x96xf32>
    %6 = tpu.matmul %4, %5, %cst {dimension_numbers = #tpu.dot_dimension_numbers<[1], [0], [0], [1], [0, 0, 1, 1], [], []>} : vector<16x32xf32>, vector<32x96xf32>, vector<16x96xf32> -> vector<16x96xf32>
    %7 = arith.addf %3, %6 : vector<16x96xf32>
    %c0_6 = arith.constant 0 : index
    %c0_7 = arith.constant 0 : index
    %8 = vector.load %arg7[%c0_6, %c0_7] : memref<16x96xf32, #tpu.memory_space<vmem>>, vector<16x96xf32>
    tpu.vector_store %arg7[%c0_6, %c0_7], %7 {strides = array<i32>} : memref<16x96xf32, #tpu.memory_space<vmem>>, vector<16x96xf32>,
    %c0_i32_8 = arith.constant 0 : i32
    %9 = arith.cmpi eq, %arg2, %c0_i32_8 : i32
    %10 = arith.extui %9 : i1 to i32
    %c0_i32_9 = arith.constant 0 : i32
    %11 = arith.cmpi ne, %10, %c0_i32_9 : i32
    scf.if %11 {
      %c0_10 = arith.constant 0 : index
      %c0_11 = arith.constant 0 : index
      %12 = vector.load %arg7[%c0_10, %c0_11] : memref<16x96xf32, #tpu.memory_space<vmem>>, vector<16x96xf32>
      %c0_12 = arith.constant 0 : index
      %c0_13 = arith.constant 0 : index
      %13 = vector.load %arg5[%c0_12, %c0_13] : memref<1x96xf32, #tpu.memory_space<vmem>>, vector<1x96xf32>
      %14 = vector.broadcast %13 : vector<1x96xf32> to vector<16x96xf32>
      %15 = arith.addf %12, %14 : vector<16x96xf32>
      %c0_14 = arith.constant 0 : index
      %c0_15 = arith.constant 0 : index
      %16 = vector.load %arg6[%c0_14, %c0_15] : memref<16x96xf32, #tpu.memory_space<vmem>>, vector<16x96xf32>
      tpu.vector_store %arg6[%c0_14, %c0_15], %15 {strides = array<i32>} : memref<16x96xf32, #tpu.memory_space<vmem>>, vector<16x96xf32>,
    } else {
    }
    return
  }
  func.func @transform_0(%arg0: i32, %arg1: i32, %arg2: i32) -> (i32, i32) {
    %c0_i32 = arith.constant 0 : i32
    return %arg0, %arg2 : i32, i32
  }
  func.func @transform_1(%arg0: i32, %arg1: i32, %arg2: i32) -> (i32, i32) {
    %c0_i32 = arith.constant 0 : i32
    return %arg2, %arg1 : i32, i32
  }
  func.func @transform_2(%arg0: i32, %arg1: i32, %arg2: i32) -> (i32, i32) {
    %c0_i32 = arith.constant 0 : i32
    %c0_i32_0 = arith.constant 0 : i32
    return %c0_i32, %arg1 : i32, i32
  }
  func.func @transform_3(%arg0: i32, %arg1: i32, %arg2: i32) -> (i32, i32) {
    %c0_i32 = arith.constant 0 : i32
    return %arg0, %arg1 : i32, i32
  }
}

</mosaic_0001>

<llo_original>
// kernel: tpu_custom_call.1
$region0: #{tpu_custom_call.1}
  #allocation0 [shape = 'u32[]', space=smem, size = 0x4, offset = 0x4, fixed_abs, tag = 'smem constant byte address 0x4 - core index']
  #allocation1 [shape = 'u32[144,128]{1,0:T(1,128)}', space=vmem, size = 0x12000, scoped, tag = 'internal scratch']
  #allocation2 [shape = 'f32[16,96]{1,0:T(8,128)}', space=vmem, size = 0x2000, scoped, tag = 'scratch operand']
  %s0 = inlined_call_operand.hbm [shape: f32[16,32], index: 0, kind: input, shape index: {}]
  %s1 = inlined_call_operand.hbm [shape: f32[32,96], index: 1, kind: input, shape index: {}]
  %s2 = inlined_call_operand.vmem [shape: f32[1,96], index: 2, kind: input, shape index: {}]
  %s3 = inlined_call_operand.hbm [shape: f32[16,96], index: 3, kind: output, shape index: {}]
  %s4 = sld [smem:[#allocation0]]
  $region38: #{tpu_custom_call.1} parent=0
    _
  %s6 = ssub.s32 1, %s4
  %s7 = scalar_select 0, %s6, %s4
  $region1: #{tpu_custom_call.1} parent=0
    #allocation3 [shape = 'u8[8192]{0}', space=vmem, size = 0x2000, scoped, tag = 'input window, operand 0, single buffered']
    #allocation4 [shape = 's32[1]{0}', space=sflag, size = 0x4, scoped, tag = 'scoped memory for tpu_custom_call.1']
    #allocation5 [shape = 's32[1]{0}', space=sflag, size = 0x4, scoped, tag = 'scoped memory for tpu_custom_call.1']
    #allocation6 [shape = 'u8[16384]{0}', space=vmem, size = 0x4000, scoped, tag = 'input window, operand 1, single buffered']
    #allocation7 [shape = 's32[1]{0}', space=sflag, size = 0x4, scoped, tag = 'scoped memory for tpu_custom_call.1']
    #allocation8 [shape = 'u8[8192]{0}', space=vmem, size = 0x2000, scoped, tag = 'output window, operand 0, single buffered']
    %8 = vsyncpa [#allocation4], 0
    %9 = vsyncpa [#allocation7], 0
    %10 = vsyncpa [#allocation5], 0
    // Predicated region
    $region2: #{tpu_custom_call.1} parent=1 // pred_check
      _
    $region3: #{tpu_custom_call.1} parent=1 // pred_check_branch
      %12 = sbr.rel (0) target = $region5
    $region4: #{tpu_custom_call.1} parent=1 // pred_region
      %s14 = ssub.s32 256, 256
      %15 = vsyncadd [#allocation4], %s14
      %s16 = sshll.u32 [#allocation3], 4
      %s17 = int_to_ptr.vmem [resolvable:$true] %s16
      %22 = dma.hbm_to_vmem [thread:$0]  %s0, 256, %s17, [#allocation4], 128, 128, 8
    $region5: #{tpu_custom_call.1} parent=1 // pred_fallthru
      _
    // Predicated region
    $region6: #{tpu_custom_call.1} parent=1 // pred_check
      _
    $region7: #{tpu_custom_call.1} parent=1 // pred_check_branch
      %24 = sbr.rel (0) target = $region9
    $region8: #{tpu_custom_call.1} parent=1 // pred_region
      %s26 = ssub.s32 512, 512
      %27 = vsyncadd [#allocation7], %s26
      %s28 = sshll.u32 [#allocation6], 4
      %s29 = int_to_ptr.vmem [resolvable:$true] %s28
      %34 = dma.hbm_to_vmem [thread:$0]  %s1, 512, %s29, [#allocation7], 128, 128, 8
    $region9: #{tpu_custom_call.1} parent=1 // pred_fallthru
      _
    // Predicated region
    $region10: #{tpu_custom_call.1} parent=1 // pred_check
      _
    $region11: #{tpu_custom_call.1} parent=1 // pred_check_branch
      %36 = sbr.rel (0) target = $region13
    $region12: #{tpu_custom_call.1} parent=1 // pred_region
      _
    $region13: #{tpu_custom_call.1} parent=1 // pred_fallthru
      _
    // Predicated region
    $region14: #{tpu_custom_call.1} parent=1 // pred_check
      _
    $region15: #{tpu_custom_call.1} parent=1 // pred_check_branch
      %38 = sbr.rel (0) target = $region17
    $region16: #{tpu_custom_call.1} parent=1 // pred_region
      %39 = dma.done [#allocation4], 256
    $region17: #{tpu_custom_call.1} parent=1 // pred_fallthru
      _
    // Predicated region
    $region18: #{tpu_custom_call.1} parent=1 // pred_check
      _
    $region19: #{tpu_custom_call.1} parent=1 // pred_check_branch
      %41 = sbr.rel (0) target = $region21
    $region20: #{tpu_custom_call.1} parent=1 // pred_region
      %42 = dma.done [#allocation7], 512
    $region21: #{tpu_custom_call.1} parent=1 // pred_fallthru
      _
    %p43 = scmp.eq.s32.totalorder 0, 0
    // Predicated region
    $region22: #{tpu_custom_call.1} parent=1 // pred_check
      %p44 = pneg %p43
    $region23: #{tpu_custom_call.1} parent=1 // pred_check_branch
      %46 = sbr.rel (%p44) target = $region25
    $region24: #{tpu_custom_call.1} parent=1 // pred_region
      %vm47 = vcmask 785408
      %48 = vst.msk [vmem:[#allocation2] sm:$0xff] %vm47, 0.0
      %49 = vst.msk [vmem:[#allocation2 + $0x8] sm:$0xff] %vm47, 0.0
    $region25: #{tpu_custom_call.1} parent=1 // pred_fallthru
      _
    %v50 = vld [vmem:[#allocation2] sm:$0xff]
    %v51 = vld [vmem:[#allocation2 + $0x8] sm:$0xff]
    %v52 = vld [vmem:[#allocation3] sm:$0xff]
    %v53 = vld [vmem:[#allocation3 + $0x8] sm:$0xff]
    %v54 = vld [vmem:[#allocation6] sm:$0xff]
    %v55 = vld [vmem:[#allocation6 + $0x8] sm:$0xff]
    %v56 = vld [vmem:[#allocation6 + $0x10] sm:$0xff]
    %v57 = vld [vmem:[#allocation6 + $0x18] sm:$0xff]
    %vm58 = vcmask 261120
    %v60 = vsel %vm58, %v52, 0
    %v63 = vsel %vm58, %v53, 0
    %65 = vmatprep.subr.mxu0 0.0
    %66 = vmatpush1.msra.mxu0 %v54
    %67 = vmatprep.subr.mxu0 0.0
    %68 = vmatpush1.msra.mxu0 %v55
    %69 = vmatprep.subr.mxu0 0.0
    %70 = vmatpush1.msra.mxu0 %v56
    %71 = vmatprep.subr.mxu0 0.0
    %72 = vmatpush1.msra.mxu0 %v57
    %73 = vmatprep.subr.mxu0 0.0
    %74 = vmatpush1.msra.mxu0 0.0
    %75 = vmatprep.subr.mxu0 0.0
    %76 = vmatpush1.msra.mxu0 0.0
    %77 = vmatprep.subr.mxu0 0.0
    %78 = vmatpush1.msra.mxu0 0.0
    %79 = vmatprep.subr.mxu0 0.0
    %80 = vmatpush1.msra.mxu0 0.0
    %81 = vmatprep.subr.mxu0 0.0
    %82 = vmatpush1.msra.mxu0 0.0
    %83 = vmatprep.subr.mxu0 0.0
    %84 = vmatpush1.msra.mxu0 0.0
    %85 = vmatprep.subr.mxu0 0.0
    %86 = vmatpush1.msra.mxu0 0.0
    %87 = vmatprep.subr.mxu0 0.0
    %88 = vmatpush1.msra.mxu0 0.0
    %89 = vmatprep.subr.mxu0 0.0
    %90 = vmatpush1.msra.mxu0 0.0
    %91 = vmatprep.subr.mxu0 0.0
    %92 = vmatpush1.msra.mxu0 0.0
    %93 = vmatprep.subr.mxu0 0.0
    %94 = vmatpush1.msra.mxu0 0.0
    %95 = vmatprep.subr.mxu0 0.0
    %96 = vmatpush1.msra.mxu0 0.0
    %97 = vmatprep.subr.mxu0 0.0
    %98 = vmatpush1.msra.mxu0 0.0
    %99 = vmatprep.subr.mxu0 0.0
    %100 = vmatpush1.msra.mxu0 0.0
    %101 = vmatprep.subr.mxu0 0.0
    %102 = vmatpush1.msra.mxu0 0.0
    %103 = vmatprep.subr.mxu0 0.0
    %104 = vmatpush1.msra.mxu0 0.0
    %105 = vmatprep.subr.mxu0 0.0
    %106 = vmatpush1.msra.mxu0 0.0
    %107 = vmatprep.subr.mxu0 0.0
    %108 = vmatpush1.msra.mxu0 0.0
    %109 = vmatprep.subr.mxu0 0.0
    %110 = vmatpush1.msra.mxu0 0.0
    %111 = vmatprep.subr.mxu0 0.0
    %112 = vmatpush1.msra.mxu0 0.0
    %113 = vmatprep.subr.mxu0 0.0
    %114 = vmatpush1.msra.mxu0 0.0
    %115 = vmatprep.subr.mxu0 0.0
    %116 = vmatpush1.msra.mxu0 0.0
    %117 = vmatprep.subr.mxu0 0.0
    %118 = vmatpush1.msra.mxu0 0.0
    %119 = vmatprep.subr.mxu0 0.0
    %120 = vmatpush1.msra.mxu0 0.0
    %121 = vmatprep.subr.mxu0 0.0
    %122 = vmatpush1.msra.mxu0 0.0
    %123 = vmatprep.subr.mxu0 0.0
    %124 = vmatpush1.msra.mxu0 0.0
    %125 = vmatprep.subr.mxu0 0.0
    %126 = vmatpush1.msra.mxu0 0.0
    %127 = vmatprep.subr.mxu0 0.0
    %128 = vmatpush1.msra.mxu0 0.0
    %129 = vmatprep.mubr.f32.mxu0 0.0
    %130 = vmatmul.mubr.f32.gmra.mrb[0].mxu0 %v60
    %v131 = vpop.f32.mrb[0].mxu0
    %v132 = vadd.f32 0.0, %v131
    %v133 = vpop.f32.mrb[0].mxu0
    %134 = vmatprep.mubr.f32.mxu0 0.0
    %135 = vmatmul.mubr.f32.gmra.mrb[0].mxu0 %v63
    %v136 = vpop.f32.mrb[0].mxu0
    %v137 = vadd.f32 0.0, %v136
    %v138 = vpop.f32.mrb[0].mxu0
    %139 = vdwg.mxu0
    %v140 = vadd.f32 %v50, %v132
    %v141 = vadd.f32 %v51, %v137
    %vm142 = vcmask 785408
    %143 = vst.msk [vmem:[#allocation2] sm:$0xff] %vm142, %v140
    %144 = vst.msk [vmem:[#allocation2 + $0x8] sm:$0xff] %vm142, %v141
    // Predicated region
    $region26: #{tpu_custom_call.1} parent=1 // pred_check
      %p145 = pneg %p43
    $region27: #{tpu_custom_call.1} parent=1 // pred_check_branch
      %147 = sbr.rel (%p145) target = $region29
    $region28: #{tpu_custom_call.1} parent=1 // pred_region
      %v148 = vld [vmem:[#allocation2] sm:$0xff]
      %v149 = vld [vmem:[#allocation2 + $0x8] sm:$0xff]
      %v150 = vld [vmem:[%s2] sm:$0x1]
      %v152 = vlaneseq
      %v153 = vshrl.u32 %v152, 7
      %v154 = vsub.s32 0, %v153
      %v155 = vrot.slane %v150, %v154
      %v157 = vadd.f32 %v148, %v155
      %v158 = vadd.f32 %v149, %v155
      %159 = vst.msk [vmem:[#allocation8] sm:$0xff] %vm142, %v157
      %160 = vst.msk [vmem:[#allocation8 + $0x8] sm:$0xff] %vm142, %v158
    $region29: #{tpu_custom_call.1} parent=1 // pred_fallthru
      _
    // Predicated region
    $region30: #{tpu_custom_call.1} parent=1 // pred_check
      _
    $region31: #{tpu_custom_call.1} parent=1 // pred_check_branch
      %162 = sbr.rel (0) target = $region33
    $region32: #{tpu_custom_call.1} parent=1 // pred_region
      %s164 = ssub.s32 256, 256
      %165 = vsyncadd [#allocation5], %s164
      %s166 = sshll.u32 [#allocation8], 4
      %s167 = int_to_ptr.vmem [resolvable:$true] %s166
      %172 = dma.vmem_to_hbm [thread:$0]  %s167, 256, %s3, [#allocation5], 128, 128, 8
    $region33: #{tpu_custom_call.1} parent=1 // pred_fallthru
      _
    // Predicated region
    $region34: #{tpu_custom_call.1} parent=1 // pred_check
      _
    $region35: #{tpu_custom_call.1} parent=1 // pred_check_branch
      %174 = sbr.rel (0) target = $region37
    $region36: #{tpu_custom_call.1} parent=1 // pred_region
      %175 = dma.done [#allocation5], 256
    $region37: #{tpu_custom_call.1} parent=1 // pred_fallthru
      _
    %176 = vsyncpa [#allocation4], 1
    %177 = vsyncpa [#allocation7], 1
    %178 = vsyncpa [#allocation5], 1

</llo_original>
